<compile_context>
chip_gen: v7x
topology: tpu7x:2x2x1
jax: 0.10.0
libtpu: 0.0.40
codegen_flags: <defaults>
</compile_context>

<pallas_src>
import jax
import jax.numpy as jnp
from jax.experimental import pallas as pl
from jax.experimental.pallas import tpu as pltpu


def _tanh_plus_kernel(x_ref, o_ref):
    # tanh goes to the EUP slot; the add/mul are free VPU filler. The kernel is
    # HBM-DMA-bound, so no effort is spent on the arithmetic expression.
    o_ref[...] = 0.5 + 0.5 * jnp.tanh(x_ref[...])


def _tanh_plus_jnp(x):
    return 0.5 + 0.5 * jnp.tanh(x)


def _sublane_multiple(dtype) -> int:
    itemsize = jnp.dtype(dtype).itemsize
    return {4: 8, 2: 16, 1: 32}.get(itemsize, 8)


def _choose_lanes(n: int) -> int:
    """Widest lane count that divides n (no tail); falls back to 128."""
    for cand in (2048, 1024, 512, 256, 128):
        if n % cand == 0:
            return cand
    return 128  # ragged: a < 128-element tail is handled outside the kernel


def _chip_params():
    """Best-effort chip detection -> (num_tensorcores, target_block_bytes).

    Block targets keep the double-buffered in+out footprint comfortably under
    each generation's scoped-VMEM default (v5e 16 MiB, v6e/v7x 32 MiB), so no
    vmem_limit_bytes override is required.
    """
    kind = ""
    try:
        kind = jax.devices()[0].device_kind.lower()
    except Exception:
        pass
    if "v7" in kind:
        # 2 TCs/chip, 32 MiB scoped (64 MiB physical) VMEM per TC, ~2x v6e HBM BW.
        return 2, 4 << 20
    if "v6" in kind:
        # 1 TC, 32 MiB scoped-VMEM default: 4 MiB blocks sit on the roofline plateau.
        return 1, 4 << 20
    # v5e and anything unknown: conservative (16 MiB scoped-VMEM default).
    return 1, 2 << 20


def _pick_block_rows(rows, lanes, itemsize, sub_mult, num_tc, target_block_bytes):
    """Sublane-aligned row-block size; balanced even-length grid on 2-TC chips."""
    if rows <= sub_mult:
        return rows  # tiny slab: one full-extent block
    tgt_rows = max(sub_mult,
                   (target_block_bytes // (lanes * itemsize)) // sub_mult * sub_mult)
    steps = pl.cdiv(rows, tgt_rows)
    if num_tc >= 2:
        # Megacore: at least 2 steps, and an even step count so the "parallel"
        # grid axis splits into near-equal halves across the two TensorCores.
        steps = max(steps, 2)
        if steps % 2:
            steps += 1
    if steps <= 1:
        return rows  # single full-slab block on 1-TC chips
    block_rows = pl.cdiv(pl.cdiv(rows, steps), sub_mult) * sub_mult
    return min(block_rows, rows)


def tanh_plus(x: jax.Array, *, donate_input: bool = False,
              target_block_bytes=None) -> jax.Array:
    """Elementwise 0.5 + 0.5*tanh(x); same shape/dtype as the input."""
    orig_shape = x.shape
    dtype = x.dtype
    itemsize = jnp.dtype(dtype).itemsize
    sub_mult = _sublane_multiple(dtype)
    num_tc, auto_tbb = _chip_params()
    tbb = target_block_bytes if target_block_bytes is not None else auto_tbb

    flat = x.reshape(-1)
    n = flat.shape[0]
    if n == 0:
        return x

    lanes = _choose_lanes(n)
    n_main = (n // lanes) * lanes  # largest lane-multiple prefix
    if n_main == 0:
        # Fewer than 128 elements: not worth a kernel launch.
        return _tanh_plus_jnp(x)

    rows = n_main // lanes
    x2d = (flat if n_main == n else flat[:n_main]).reshape(rows, lanes)

    block_rows = _pick_block_rows(rows, lanes, itemsize, sub_mult, num_tc, tbb)
    grid = (pl.cdiv(rows, block_rows),)

    in_spec_kwargs = {}
    if num_tc >= 2 and block_rows * lanes * itemsize <= (4 << 20):
        # v7x: each step's DMA completes ~2x faster, so a third input buffer
        # hides DMA-issue latency; still well inside the 32 MiB scoped budget.
        in_spec_kwargs["pipeline_mode"] = pl.Buffered(3)
    in_spec = pl.BlockSpec((block_rows, lanes), lambda i: (i, 0), **in_spec_kwargs)
    out_spec = pl.BlockSpec((block_rows, lanes), lambda i: (i, 0))

    cost = pl.CostEstimate(
        flops=2 * n_main,            # one mul + one add per element
        transcendentals=n_main,      # one tanh per element
        bytes_accessed=2 * n_main * itemsize,
    )

    out2d = pl.pallas_call(
        _tanh_plus_kernel,
        out_shape=jax.ShapeDtypeStruct((rows, lanes), dtype),
        grid_spec=pltpu.PrefetchScalarGridSpec(
            num_scalar_prefetch=0,
            grid=grid,
            in_specs=[in_spec],
            out_specs=out_spec,
        ),
        compiler_params=pltpu.CompilerParams(
            dimension_semantics=("parallel",),
        ),
        cost_estimate=cost,
        input_output_aliases=({0: 0} if donate_input else {}),
    )(x2d)

    if n_main == n:
        return out2d.reshape(orig_shape)
    # Ragged tail (< 128 elements): plain jnp — avoids the old whole-tensor
    # pad + output-slice passes on this mem-bound kernel.
    tail = _tanh_plus_jnp(flat[n_main:])
    return jnp.concatenate([out2d.reshape(-1), tail]).reshape(orig_shape)


if __name__ == "__main__":
    key = jax.random.PRNGKey(0)

    # 1) Small NCHW activation, single-block fast path (2*4*16*16 = 2048 elems).
    x = jax.random.normal(key, (2, 4, 16, 16), dtype=jnp.float32)
    y = tanh_plus(x)
    jax.block_until_ready(y)
    y_ref = 0.5 + 0.5 * jnp.tanh(x)
    assert y.shape == x.shape and y.dtype == x.dtype
    assert jnp.allclose(y, y_ref, atol=1e-6, rtol=1e-6)

    # 2) Multi-step grid path (small target block forces several row blocks).
    x2 = jax.random.normal(jax.random.PRNGKey(1), (4, 8, 32, 32), dtype=jnp.float32)
    y2 = tanh_plus(x2, target_block_bytes=64 << 10)
    jax.block_until_ready(y2)
    y2_ref = 0.5 + 0.5 * jnp.tanh(x2)
    assert y2.shape == x2.shape and y2.dtype == x2.dtype
    assert jnp.allclose(y2, y2_ref, atol=1e-6, rtol=1e-6)

    # 3) Ragged element count (3*5*7*11 = 1155 = 9*128 + 3): Pallas prefix + jnp tail.
    x3 = jax.random.normal(jax.random.PRNGKey(2), (3, 5, 7, 11), dtype=jnp.float32)
    y3 = tanh_plus(x3)
    jax.block_until_ready(y3)
    y3_ref = 0.5 + 0.5 * jnp.tanh(x3)
    assert y3.shape == x3.shape and y3.dtype == x3.dtype
    assert jnp.allclose(y3, y3_ref, atol=1e-6, rtol=1e-6)

    # 4) bf16 path (dtype-aware sublane multiple = 16).
    x4 = jax.random.normal(jax.random.PRNGKey(3), (4, 8, 32, 32), dtype=jnp.bfloat16)
    y4 = tanh_plus(x4)
    jax.block_until_ready(y4)
    y4_ref = 0.5 + 0.5 * jnp.tanh(x4.astype(jnp.float32))
    assert y4.shape == x4.shape and y4.dtype == x4.dtype
    assert jnp.allclose(y4.astype(jnp.float32), y4_ref, atol=2e-2, rtol=2e-2)

    print("KERNEL_OK")
</pallas_src>

<mosaic_0001>
module attributes {stable_mosaic.version = 11 : i64} {
  func.func @_tanh_plus_kernel(%arg0: i32, %arg1: memref<1x2048xf32, #tpu.memory_space<vmem>>, %arg2: memref<1x2048xf32, #tpu.memory_space<vmem>>) attributes {dimension_semantics = [#tpu.dimension_semantics<parallel>], iteration_bounds = array<i64: 1>, scalar_prefetch = 0 : i64, scratch_operands = 0 : i64, tpu.core_type = #tpu.core_type<tc>, window_params = [{transform_indices = @transform_0, window_bounds = array<i64: 1, 2048>}, {transform_indices = @transform_1, window_bounds = array<i64: 1, 2048>}]} {
    %c0 = arith.constant 0 : index
    %c0_0 = arith.constant 0 : index
    %0 = vector.load %arg1[%c0, %c0_0] : memref<1x2048xf32, #tpu.memory_space<vmem>>, vector<1x2048xf32>
    %1 = math.tanh %0 : vector<1x2048xf32>
    %cst = arith.constant 5.000000e-01 : f32
    %2 = vector.broadcast %cst : f32 to vector<1x2048xf32>
    %3 = arith.mulf %2, %1 : vector<1x2048xf32>
    %cst_1 = arith.constant 5.000000e-01 : f32
    %4 = vector.broadcast %cst_1 : f32 to vector<1x2048xf32>
    %5 = arith.addf %4, %3 : vector<1x2048xf32>
    %c0_2 = arith.constant 0 : index
    %c0_3 = arith.constant 0 : index
    %6 = vector.load %arg2[%c0_2, %c0_3] : memref<1x2048xf32, #tpu.memory_space<vmem>>, vector<1x2048xf32>
    tpu.vector_store %arg2[%c0_2, %c0_3], %5 {strides = array<i32>} : memref<1x2048xf32, #tpu.memory_space<vmem>>, vector<1x2048xf32>,
    return
  }
  func.func @transform_0(%arg0: i32) -> (i32, i32) {
    %c0_i32 = arith.constant 0 : i32
    %c0_i32_0 = arith.constant 0 : i32
    return %arg0, %c0_i32 : i32, i32
  }
  func.func @transform_1(%arg0: i32) -> (i32, i32) {
    %c0_i32 = arith.constant 0 : i32
    %c0_i32_0 = arith.constant 0 : i32
    return %arg0, %c0_i32 : i32, i32
  }
}

</mosaic_0001>

<llo_original>
// kernel: tpu_custom_call.1
$region0: #{tpu_custom_call.1}
  #allocation0 [shape = 'u32[]', space=smem, size = 0x4, offset = 0x4, fixed_abs, tag = 'smem constant byte address 0x4 - core index']
  #allocation1 [shape = 'u32[144,128]{1,0:T(1,128)}', space=vmem, size = 0x12000, scoped, tag = 'internal scratch']
  %s0 = inlined_call_operand.hbm [shape: f32[1,2048], index: 0, kind: input, shape index: {}]
  %s1 = inlined_call_operand.hbm [shape: f32[1,2048], index: 1, kind: output, shape index: {}]
  %s2 = sld [smem:[#allocation0]]
  $region18: #{tpu_custom_call.1} parent=0
    _
  %s4 = ssub.s32 1, %s2
  %s5 = scalar_select 0, %s4, %s2
  $region1: #{tpu_custom_call.1} parent=0
    #allocation2 [shape = 'u8[8192]{0}', space=vmem, size = 0x2000, scoped, tag = 'input window, operand 0, single buffered']
    #allocation3 [shape = 's32[1]{0}', space=sflag, size = 0x4, scoped, tag = 'scoped memory for tpu_custom_call.1']
    #allocation4 [shape = 's32[1]{0}', space=sflag, size = 0x4, scoped, tag = 'scoped memory for tpu_custom_call.1']
    #allocation5 [shape = 'u8[8192]{0}', space=vmem, size = 0x2000, scoped, tag = 'output window, operand 0, single buffered']
    %6 = vsyncpa [#allocation3], 0
    %7 = vsyncpa [#allocation4], 0
    // Predicated region
    $region2: #{tpu_custom_call.1} parent=1 // pred_check
      _
    $region3: #{tpu_custom_call.1} parent=1 // pred_check_branch
      %9 = sbr.rel (0) target = $region5
    $region4: #{tpu_custom_call.1} parent=1 // pred_region
      %s11 = ssub.s32 256, 256
      %12 = vsyncadd [#allocation3], %s11
      %s14 = sshll.u32 [#allocation2], 4
      %s15 = int_to_ptr.vmem [resolvable:$true] %s14
      %17 = dma.hbm_to_vmem [thread:$0]  %s0, 256, %s15, [#allocation3]
    $region5: #{tpu_custom_call.1} parent=1 // pred_fallthru
      _
    // Predicated region
    $region6: #{tpu_custom_call.1} parent=1 // pred_check
      _
    $region7: #{tpu_custom_call.1} parent=1 // pred_check_branch
      %19 = sbr.rel (0) target = $region9
    $region8: #{tpu_custom_call.1} parent=1 // pred_region
      %20 = dma.done [#allocation3], 256
    $region9: #{tpu_custom_call.1} parent=1 // pred_fallthru
      _
    %v21 = vld [vmem:[#allocation2] sm:$0xff]
    %v22 = vld [vmem:[#allocation2 + $0x8] sm:$0xff]
    %v23 = vtanh.pop %v21
    %v24 = vtanh.pop %v22
    %v25 = vmul.f32 %v23, 0.5
    %v26 = vmul.f32 %v24, 0.5
    %v27 = vadd.f32 %v25, 0.5
    %v28 = vadd.f32 %v26, 0.5
    %29 = vst [vmem:[#allocation5] sm:$0xff] %v27
    %30 = vst [vmem:[#allocation5 + $0x8] sm:$0xff] %v28
    // Predicated region
    $region10: #{tpu_custom_call.1} parent=1 // pred_check
      _
    $region11: #{tpu_custom_call.1} parent=1 // pred_check_branch
      %32 = sbr.rel (0) target = $region13
    $region12: #{tpu_custom_call.1} parent=1 // pred_region
      %s34 = ssub.s32 256, 256
      %35 = vsyncadd [#allocation4], %s34
      %s37 = sshll.u32 [#allocation5], 4
      %s38 = int_to_ptr.vmem [resolvable:$true] %s37
      %40 = dma.vmem_to_hbm [thread:$0]  %s38, 256, %s1, [#allocation4]
    $region13: #{tpu_custom_call.1} parent=1 // pred_fallthru
      _
    // Predicated region
    $region14: #{tpu_custom_call.1} parent=1 // pred_check
      _
    $region15: #{tpu_custom_call.1} parent=1 // pred_check_branch
      %42 = sbr.rel (0) target = $region17
    $region16: #{tpu_custom_call.1} parent=1 // pred_region
      %43 = dma.done [#allocation4], 256
    $region17: #{tpu_custom_call.1} parent=1 // pred_fallthru
      _
    %44 = vsyncpa [#allocation3], 1
    %45 = vsyncpa [#allocation4], 1

</llo_original>
